<compile_context>
chip_gen: v7x
topology: tpu7x:2x2x1
jax: 0.10.0
libtpu: 0.0.40
codegen_flags: <defaults>
</compile_context>

<pallas_src>
import functools

import jax
import jax.numpy as jnp
from jax import lax
from jax.experimental import pallas as pl
from jax.experimental.pallas import tpu as pltpu


def _basic_block_kernel(x_ref, w1_ref, b1_ref, w2_ref, b2_ref, o_ref,
                        pad_ref, taps_ref, *, H, W):
    # x_ref   : (1, Cin, HW)        f32   one batch element, channels x flat-spatial
    # w1_ref  : (Cmid_p, Cin)       bf16  1x1 conv weights, BN1 scale folded in
    # b1_ref  : (Cmid_p, 1)         f32   folded BN1 bias
    # w2_ref  : (Cout, 9*Cmid_p)    bf16  3x3 conv weights (tap-major), BN2 scale folded
    # b2_ref  : (Cout, 1)           f32   folded BN2 bias
    # o_ref   : (1, Cout, HW)
    # pad_ref : (Cmid_p, HW+2W+2)   bf16  flat zero-padded intermediate (scratch)
    # taps_ref: (9*Cmid_p, HW)      bf16  im2col tap matrix (scratch)
    HW = H * W
    Cmid_p = w1_ref.shape[0]

    x = x_ref[0]                                         # (Cin, HW) f32

    # ---- conv1 (1x1) + BN1 + LeakyReLU(0.1); bf16 MXU operands, f32 accumulate ----
    mid = jnp.dot(w1_ref[...], x.astype(jnp.bfloat16),
                  preferred_element_type=jnp.float32)    # (Cmid_p, HW)
    mid = mid + b1_ref[...]
    mid = jnp.where(mid >= 0, mid, 0.1 * mid)

    # ---- flat zero-padded buffer: every 3x3 tap becomes a contiguous lane slice ----
    # Only the (W+1)-wide borders are zeroed (cheap masked stores), interior is
    # fully overwritten every grid step.
    border = jnp.zeros((Cmid_p, W + 1), jnp.bfloat16)
    pad_ref[:, 0:W + 1] = border                                       # leading zeros
    pad_ref[:, W + 1 + HW:W + 1 + HW + W + 1] = border                 # trailing zeros
    pad_ref[:, W + 1:W + 1 + HW] = mid.astype(jnp.bfloat16)            # interior

    # Horizontal edge masks: the flat layout wraps rows, those taps must read zero.
    xi = lax.broadcasted_iota(jnp.int32, (1, HW), 1) % W
    not_left = xi != 0
    not_right = xi != (W - 1)

    # ---- im2col: 9 shifted taps -> one (9*Cmid_p, HW) matrix (aligned row blocks) ----
    for ky in range(3):
        for kx in range(3):
            s0 = ky * W + kx
            tap = pad_ref[:, s0:s0 + HW]                 # (Cmid_p, HW) bf16
            if kx == 0:
                tap = jnp.where(not_left, tap, jnp.zeros_like(tap))
            elif kx == 2:
                tap = jnp.where(not_right, tap, jnp.zeros_like(tap))
            r0 = (ky * 3 + kx) * Cmid_p
            taps_ref[r0:r0 + Cmid_p, :] = tap

    # ---- conv2 (3x3, pad=1) as ONE fused MXU matmul + BN2 + LeakyReLU(0.1) ----
    out = jnp.dot(w2_ref[...], taps_ref[...],
                  preferred_element_type=jnp.float32)    # (Cout, HW)
    out = out + b2_ref[...]
    out = jnp.where(out >= 0, out, 0.1 * out)

    # ---- residual add (Cout == Cin in the Darknet BasicBlock), f32 ----
    out = out + x
    o_ref[0] = out.astype(o_ref.dtype)


def basic_block_pallas(x_nchw, w1_oihw, w2_oihw, bn1, bn2, eps=1e-5):
    """x_nchw: (N, Cin, H, W). Returns (N, Cout, H, W). Eval-mode BatchNorm."""
    N, Cin, H, W = x_nchw.shape
    Cmid = w1_oihw.shape[0]
    Cout = w2_oihw.shape[0]
    assert Cout == Cin, "Darknet BasicBlock residual requires Cout == Cin"
    HW = H * W
    Cmid_p = ((Cmid + 15) // 16) * 16           # sublane-tile aligned for bf16

    # Channels-first, flat-spatial layout: pure reshape, no HBM transpose.
    x = x_nchw.reshape(N, Cin, HW)

    # Fold eval-mode BN into the conv weights (scale) + a per-channel bias.
    g1, b1, m1, v1 = bn1
    g2, b2, m2, v2 = bn2
    s1 = g1 / jnp.sqrt(v1 + eps)
    s2 = g2 / jnp.sqrt(v2 + eps)

    w1 = w1_oihw.reshape(Cmid, Cin) * s1[:, None]                       # (Cmid, Cin)
    w1 = jnp.pad(w1, ((0, Cmid_p - Cmid), (0, 0))).astype(jnp.bfloat16)
    bias1 = jnp.pad(b1 - m1 * s1, (0, Cmid_p - Cmid))
    bias1 = bias1.reshape(Cmid_p, 1).astype(jnp.float32)

    # w2: (Cout, Cmid, 3, 3) -> (Cout, 3, 3, Cmid_p) -> (Cout, 9*Cmid_p), tap-major.
    w2 = jnp.transpose(w2_oihw, (0, 2, 3, 1)) * s2[:, None, None, None]
    w2 = jnp.pad(w2, ((0, 0), (0, 0), (0, 0), (0, Cmid_p - Cmid)))
    w2 = w2.reshape(Cout, 9 * Cmid_p).astype(jnp.bfloat16)
    bias2 = (b2 - m2 * s2).reshape(Cout, 1).astype(jnp.float32)

    kernel = functools.partial(_basic_block_kernel, H=H, W=W)

    out = pl.pallas_call(
        kernel,
        out_shape=jax.ShapeDtypeStruct((N, Cout, HW), x_nchw.dtype),
        grid_spec=pltpu.PrefetchScalarGridSpec(
            num_scalar_prefetch=0,
            grid=(N,),
            in_specs=[
                pl.BlockSpec((1, Cin, HW), lambda n: (n, 0, 0)),
                pl.BlockSpec((Cmid_p, Cin), lambda n: (0, 0)),
                pl.BlockSpec((Cmid_p, 1), lambda n: (0, 0)),
                pl.BlockSpec((Cout, 9 * Cmid_p), lambda n: (0, 0)),
                pl.BlockSpec((Cout, 1), lambda n: (0, 0)),
            ],
            out_specs=pl.BlockSpec((1, Cout, HW), lambda n: (n, 0, 0)),
            scratch_shapes=[
                pltpu.VMEM((Cmid_p, HW + 2 * W + 2), jnp.bfloat16),   # padded mid
                pltpu.VMEM((9 * Cmid_p, HW), jnp.bfloat16),           # im2col taps
            ],
        ),
        compiler_params=pltpu.CompilerParams(
            dimension_semantics=("parallel",),
            vmem_limit_bytes=32 * 1024 * 1024,
        ),
    )(x, w1, bias1, w2, bias2)

    return out.reshape(N, Cout, H, W)


def basic_block_reference(x_nchw, w1_oihw, w2_oihw, bn1, bn2, eps=1e-5):
    """Pure-JAX reference mirroring the PyTorch forward (eval-mode BN, f32)."""
    def bn_lrelu(y, params):
        g, b, m, v = params
        y = (y - m[None, :, None, None]) / jnp.sqrt(v + eps)[None, :, None, None]
        y = y * g[None, :, None, None] + b[None, :, None, None]
        return jnp.where(y >= 0, y, 0.1 * y)

    dn = ('NCHW', 'OIHW', 'NCHW')
    out = lax.conv_general_dilated(x_nchw, w1_oihw, (1, 1), 'VALID',
                                   dimension_numbers=dn)
    out = bn_lrelu(out, bn1)
    out = lax.conv_general_dilated(out, w2_oihw, (1, 1), ((1, 1), (1, 1)),
                                   dimension_numbers=dn)
    out = bn_lrelu(out, bn2)
    return out + x_nchw


if __name__ == "__main__":
    # Small shapes consistent with BasicBlock(inputs=4, outputs=[2, 4])
    N, Cin, H, W = 2, 4, 16, 16
    Cmid, Cout = 2, 4            # outputs = [2, 4]; Cout == Cin for the residual

    key = jax.random.PRNGKey(0)
    k = jax.random.split(key, 10)
    x = jax.random.normal(k[0], (N, Cin, H, W), jnp.float32)
    w1 = 0.1 * jax.random.normal(k[1], (Cmid, Cin, 1, 1), jnp.float32)   # OIHW
    w2 = 0.1 * jax.random.normal(k[2], (Cout, Cmid, 3, 3), jnp.float32)  # OIHW

    # BN parameters (gamma, beta, running_mean, running_var)
    bn1 = (1.0 + 0.1 * jax.random.normal(k[3], (Cmid,), jnp.float32),
           0.1 * jax.random.normal(k[4], (Cmid,), jnp.float32),
           0.1 * jax.random.normal(k[5], (Cmid,), jnp.float32),
           jnp.abs(1.0 + 0.1 * jax.random.normal(k[6], (Cmid,), jnp.float32)))
    bn2 = (1.0 + 0.1 * jax.random.normal(k[7], (Cout,), jnp.float32),
           0.1 * jax.random.normal(k[8], (Cout,), jnp.float32),
           0.1 * jax.random.normal(k[9], (Cout,), jnp.float32),
           jnp.abs(1.0 + 0.05 * jax.random.normal(k[0], (Cout,), jnp.float32)))

    out = jax.block_until_ready(basic_block_pallas(x, w1, w2, bn1, bn2))
    ref = jax.block_until_ready(basic_block_reference(x, w1, w2, bn1, bn2))

    assert out.shape == (N, Cout, H, W), out.shape
    # Tolerance accounts for bf16 matmul operands (f32 accumulation) vs f32 reference.
    max_err = jnp.max(jnp.abs(out - ref))
    assert jnp.allclose(out, ref, atol=3e-2, rtol=3e-2), f"max abs err = {max_err}"

    print("KERNEL_OK")
</pallas_src>

<mosaic_0001>
module attributes {stable_mosaic.version = 11 : i64} {
  func.func @_basic_block_kernel(%arg0: i32, %arg1: memref<1x4x256xf32, #tpu.memory_space<vmem>>, %arg2: memref<16x4xbf16, #tpu.memory_space<vmem>>, %arg3: memref<16x1xf32, #tpu.memory_space<vmem>>, %arg4: memref<4x144xbf16, #tpu.memory_space<vmem>>, %arg5: memref<4x1xf32, #tpu.memory_space<vmem>>, %arg6: memref<1x4x256xf32, #tpu.memory_space<vmem>>, %arg7: memref<16x290xbf16, #tpu.memory_space<vmem>>, %arg8: memref<144x256xbf16, #tpu.memory_space<vmem>>) attributes {dimension_semantics = [#tpu.dimension_semantics<parallel>], iteration_bounds = array<i64: 2>, scalar_prefetch = 0 : i64, scratch_operands = 2 : i64, tpu.core_type = #tpu.core_type<tc>, window_params = [{transform_indices = @transform_0, window_bounds = array<i64: 1, 4, 256>}, {pipeline_mode = #tpu.pipeline_mode<synchronous>, transform_indices = @transform_1, window_bounds = array<i64: 16, 4>}, {pipeline_mode = #tpu.pipeline_mode<synchronous>, transform_indices = @transform_2, window_bounds = array<i64: 16, 1>}, {pipeline_mode = #tpu.pipeline_mode<synchronous>, transform_indices = @transform_3, window_bounds = array<i64: 4, 144>}, {pipeline_mode = #tpu.pipeline_mode<synchronous>, transform_indices = @transform_4, window_bounds = array<i64: 4, 1>}, {transform_indices = @transform_5, window_bounds = array<i64: 1, 4, 256>}]} {
    %c0 = arith.constant 0 : index
    %c0_0 = arith.constant 0 : index
    %c0_1 = arith.constant 0 : index
    %0 = vector.load %arg1[%c0, %c0_0, %c0_1] : memref<1x4x256xf32, #tpu.memory_space<vmem>>, vector<1x4x256xf32>
    %1 = vector.shape_cast %0 : vector<1x4x256xf32> to vector<4x256xf32>
    %c0_2 = arith.constant 0 : index
    %c0_3 = arith.constant 0 : index
    %2 = vector.load %arg2[%c0_2, %c0_3] : memref<16x4xbf16, #tpu.memory_space<vmem>>, vector<16x4xbf16>
    %3 = arith.truncf %1 : vector<4x256xf32> to vector<4x256xbf16>
    %cst = arith.constant dense<0.000000e+00> : vector<16x256xf32>
    %4 = tpu.matmul %2, %3, %cst {dimension_numbers = #tpu.dot_dimension_numbers<[1], [0], [0], [1], [0, 0, 1, 1], [], []>} : vector<16x4xbf16>, vector<4x256xbf16>, vector<16x256xf32> -> vector<16x256xf32>
    %c0_4 = arith.constant 0 : index
    %c0_5 = arith.constant 0 : index
    %5 = vector.load %arg3[%c0_4, %c0_5] : memref<16x1xf32, #tpu.memory_space<vmem>>, vector<16x1xf32>
    %6 = vector.broadcast %5 : vector<16x1xf32> to vector<16x256xf32>
    %7 = arith.addf %4, %6 : vector<16x256xf32>
    %cst_6 = arith.constant 0.000000e+00 : f32
    %8 = vector.broadcast %cst_6 : f32 to vector<16x256xf32>
    %9 = arith.cmpf oge, %7, %8 : vector<16x256xf32>
    %cst_7 = arith.constant 1.000000e-01 : f32
    %10 = vector.broadcast %cst_7 : f32 to vector<16x256xf32>
    %11 = arith.mulf %10, %7 : vector<16x256xf32>
    %12 = arith.select %9, %7, %11 : vector<16x256xi1>, vector<16x256xf32>
    %cst_8 = arith.constant 0.000000e+00 : bf16
    %13 = vector.broadcast %cst_8 : bf16 to vector<16x17xbf16>
    %c0_9 = arith.constant 0 : index
    %c0_10 = arith.constant 0 : index
    %14 = vector.load %arg7[%c0_9, %c0_10] : memref<16x290xbf16, #tpu.memory_space<vmem>>, vector<16x17xbf16>
    tpu.vector_store %arg7[%c0_9, %c0_10], %13 {strides = array<i32>} : memref<16x290xbf16, #tpu.memory_space<vmem>>, vector<16x17xbf16>,
    %c0_11 = arith.constant 0 : index
    %c273 = arith.constant 273 : index
    %15 = vector.load %arg7[%c0_11, %c273] : memref<16x290xbf16, #tpu.memory_space<vmem>>, vector<16x17xbf16>
    tpu.vector_store %arg7[%c0_11, %c273], %13 {strides = array<i32>} : memref<16x290xbf16, #tpu.memory_space<vmem>>, vector<16x17xbf16>,
    %16 = arith.truncf %12 : vector<16x256xf32> to vector<16x256xbf16>
    %c0_12 = arith.constant 0 : index
    %c17 = arith.constant 17 : index
    %17 = vector.load %arg7[%c0_12, %c17] : memref<16x290xbf16, #tpu.memory_space<vmem>>, vector<16x256xbf16>
    tpu.vector_store %arg7[%c0_12, %c17], %16 {strides = array<i32>} : memref<16x290xbf16, #tpu.memory_space<vmem>>, vector<16x256xbf16>,
    %18 = tpu.iota {dimensions = array<i32: 1>} : vector<1x256xi32>
    %c16_i32 = arith.constant 16 : i32
    %c0_i32 = arith.constant 0 : i32
    %19 = arith.cmpi eq, %c16_i32, %c0_i32 : i32
    %c1_i32 = arith.constant 1 : i32
    %20 = arith.select %19, %c1_i32, %c16_i32 : i32
    %21 = vector.broadcast %20 : i32 to vector<1x256xi32>
    %22 = arith.remsi %18, %21 : vector<1x256xi32>
    %c0_i32_13 = arith.constant 0 : i32
    %23 = vector.broadcast %c0_i32_13 : i32 to vector<1x256xi32>
    %24 = arith.cmpi ne, %22, %23 : vector<1x256xi32>
    %c0_i32_14 = arith.constant 0 : i32
    %25 = vector.broadcast %c0_i32_14 : i32 to vector<1x256xi32>
    %26 = arith.cmpi slt, %22, %25 : vector<1x256xi32>
    %c0_i32_15 = arith.constant 0 : i32
    %27 = arith.cmpi slt, %20, %c0_i32_15 : i32
    %28 = vector.broadcast %27 : i1 to vector<1x256xi1>
    %29 = vector.broadcast %28 : vector<1x256xi1> to vector<1x256xi1>
    %30 = arith.xori %26, %29 : vector<1x256xi1>
    %31 = arith.andi %30, %24 : vector<1x256xi1>
    %32 = vector.broadcast %20 : i32 to vector<1x256xi32>
    %33 = arith.addi %22, %32 : vector<1x256xi32>
    %34 = arith.select %31, %33, %22 : vector<1x256xi1>, vector<1x256xi32>
    %c0_i32_16 = arith.constant 0 : i32
    %35 = vector.broadcast %c0_i32_16 : i32 to vector<1x256xi32>
    %36 = arith.cmpi ne, %34, %35 : vector<1x256xi32>
    %c15_i32 = arith.constant 15 : i32
    %37 = vector.broadcast %c15_i32 : i32 to vector<1x256xi32>
    %38 = arith.cmpi ne, %34, %37 : vector<1x256xi32>
    %c0_17 = arith.constant 0 : index
    %c0_18 = arith.constant 0 : index
    %39 = vector.load %arg7[%c0_17, %c0_18] : memref<16x290xbf16, #tpu.memory_space<vmem>>, vector<16x256xbf16>
    %cst_19 = arith.constant 0.000000e+00 : bf16
    %40 = vector.broadcast %cst_19 : bf16 to vector<16x256xbf16>
    %41 = vector.shape_cast %36 : vector<1x256xi1> to vector<1x256xi1>
    %42 = vector.broadcast %41 : vector<1x256xi1> to vector<16x256xi1>
    %43 = arith.select %42, %39, %40 : vector<16x256xi1>, vector<16x256xbf16>
    %c0_20 = arith.constant 0 : index
    %c0_21 = arith.constant 0 : index
    %44 = vector.load %arg8[%c0_20, %c0_21] : memref<144x256xbf16, #tpu.memory_space<vmem>>, vector<16x256xbf16>
    tpu.vector_store %arg8[%c0_20, %c0_21], %43 {strides = array<i32>} : memref<144x256xbf16, #tpu.memory_space<vmem>>, vector<16x256xbf16>,
    %c0_22 = arith.constant 0 : index
    %c1 = arith.constant 1 : index
    %45 = vector.load %arg7[%c0_22, %c1] : memref<16x290xbf16, #tpu.memory_space<vmem>>, vector<16x256xbf16>
    %c16 = arith.constant 16 : index
    %c0_23 = arith.constant 0 : index
    %46 = vector.load %arg8[%c16, %c0_23] : memref<144x256xbf16, #tpu.memory_space<vmem>>, vector<16x256xbf16>
    tpu.vector_store %arg8[%c16, %c0_23], %45 {strides = array<i32>} : memref<144x256xbf16, #tpu.memory_space<vmem>>, vector<16x256xbf16>,
    %c0_24 = arith.constant 0 : index
    %c2 = arith.constant 2 : index
    %47 = vector.load %arg7[%c0_24, %c2] : memref<16x290xbf16, #tpu.memory_space<vmem>>, vector<16x256xbf16>
    %cst_25 = arith.constant 0.000000e+00 : bf16
    %48 = vector.broadcast %cst_25 : bf16 to vector<16x256xbf16>
    %49 = vector.shape_cast %38 : vector<1x256xi1> to vector<1x256xi1>
    %50 = vector.broadcast %49 : vector<1x256xi1> to vector<16x256xi1>
    %51 = arith.select %50, %47, %48 : vector<16x256xi1>, vector<16x256xbf16>
    %c32 = arith.constant 32 : index
    %c0_26 = arith.constant 0 : index
    %52 = vector.load %arg8[%c32, %c0_26] : memref<144x256xbf16, #tpu.memory_space<vmem>>, vector<16x256xbf16>
    tpu.vector_store %arg8[%c32, %c0_26], %51 {strides = array<i32>} : memref<144x256xbf16, #tpu.memory_space<vmem>>, vector<16x256xbf16>,
    %c0_27 = arith.constant 0 : index
    %c16_28 = arith.constant 16 : index
    %53 = vector.load %arg7[%c0_27, %c16_28] : memref<16x290xbf16, #tpu.memory_space<vmem>>, vector<16x256xbf16>
    %cst_29 = arith.constant 0.000000e+00 : bf16
    %54 = vector.broadcast %cst_29 : bf16 to vector<16x256xbf16>
    %55 = vector.shape_cast %36 : vector<1x256xi1> to vector<1x256xi1>
    %56 = vector.broadcast %55 : vector<1x256xi1> to vector<16x256xi1>
    %57 = arith.select %56, %53, %54 : vector<16x256xi1>, vector<16x256xbf16>
    %c48 = arith.constant 48 : index
    %c0_30 = arith.constant 0 : index
    %58 = vector.load %arg8[%c48, %c0_30] : memref<144x256xbf16, #tpu.memory_space<vmem>>, vector<16x256xbf16>
    tpu.vector_store %arg8[%c48, %c0_30], %57 {strides = array<i32>} : memref<144x256xbf16, #tpu.memory_space<vmem>>, vector<16x256xbf16>,
    %c0_31 = arith.constant 0 : index
    %c17_32 = arith.constant 17 : index
    %59 = vector.load %arg7[%c0_31, %c17_32] : memref<16x290xbf16, #tpu.memory_space<vmem>>, vector<16x256xbf16>
    %c64 = arith.constant 64 : index
    %c0_33 = arith.constant 0 : index
    %60 = vector.load %arg8[%c64, %c0_33] : memref<144x256xbf16, #tpu.memory_space<vmem>>, vector<16x256xbf16>
    tpu.vector_store %arg8[%c64, %c0_33], %59 {strides = array<i32>} : memref<144x256xbf16, #tpu.memory_space<vmem>>, vector<16x256xbf16>,
    %c0_34 = arith.constant 0 : index
    %c18 = arith.constant 18 : index
    %61 = vector.load %arg7[%c0_34, %c18] : memref<16x290xbf16, #tpu.memory_space<vmem>>, vector<16x256xbf16>
    %cst_35 = arith.constant 0.000000e+00 : bf16
    %62 = vector.broadcast %cst_35 : bf16 to vector<16x256xbf16>
    %63 = vector.shape_cast %38 : vector<1x256xi1> to vector<1x256xi1>
    %64 = vector.broadcast %63 : vector<1x256xi1> to vector<16x256xi1>
    %65 = arith.select %64, %61, %62 : vector<16x256xi1>, vector<16x256xbf16>
    %c80 = arith.constant 80 : index
    %c0_36 = arith.constant 0 : index
    %66 = vector.load %arg8[%c80, %c0_36] : memref<144x256xbf16, #tpu.memory_space<vmem>>, vector<16x256xbf16>
    tpu.vector_store %arg8[%c80, %c0_36], %65 {strides = array<i32>} : memref<144x256xbf16, #tpu.memory_space<vmem>>, vector<16x256xbf16>,
    %c0_37 = arith.constant 0 : index
    %c32_38 = arith.constant 32 : index
    %67 = vector.load %arg7[%c0_37, %c32_38] : memref<16x290xbf16, #tpu.memory_space<vmem>>, vector<16x256xbf16>
    %cst_39 = arith.constant 0.000000e+00 : bf16
    %68 = vector.broadcast %cst_39 : bf16 to vector<16x256xbf16>
    %69 = vector.shape_cast %36 : vector<1x256xi1> to vector<1x256xi1>
    %70 = vector.broadcast %69 : vector<1x256xi1> to vector<16x256xi1>
    %71 = arith.select %70, %67, %68 : vector<16x256xi1>, vector<16x256xbf16>
    %c96 = arith.constant 96 : index
    %c0_40 = arith.constant 0 : index
    %72 = vector.load %arg8[%c96, %c0_40] : memref<144x256xbf16, #tpu.memory_space<vmem>>, vector<16x256xbf16>
    tpu.vector_store %arg8[%c96, %c0_40], %71 {strides = array<i32>} : memref<144x256xbf16, #tpu.memory_space<vmem>>, vector<16x256xbf16>,
    %c0_41 = arith.constant 0 : index
    %c33 = arith.constant 33 : index
    %73 = vector.load %arg7[%c0_41, %c33] : memref<16x290xbf16, #tpu.memory_space<vmem>>, vector<16x256xbf16>
    %c112 = arith.constant 112 : index
    %c0_42 = arith.constant 0 : index
    %74 = vector.load %arg8[%c112, %c0_42] : memref<144x256xbf16, #tpu.memory_space<vmem>>, vector<16x256xbf16>
    tpu.vector_store %arg8[%c112, %c0_42], %73 {strides = array<i32>} : memref<144x256xbf16, #tpu.memory_space<vmem>>, vector<16x256xbf16>,
    %c0_43 = arith.constant 0 : index
    %c34 = arith.constant 34 : index
    %75 = vector.load %arg7[%c0_43, %c34] : memref<16x290xbf16, #tpu.memory_space<vmem>>, vector<16x256xbf16>
    %cst_44 = arith.constant 0.000000e+00 : bf16
    %76 = vector.broadcast %cst_44 : bf16 to vector<16x256xbf16>
    %77 = vector.shape_cast %38 : vector<1x256xi1> to vector<1x256xi1>
    %78 = vector.broadcast %77 : vector<1x256xi1> to vector<16x256xi1>
    %79 = arith.select %78, %75, %76 : vector<16x256xi1>, vector<16x256xbf16>
    %c128 = arith.constant 128 : index
    %c0_45 = arith.constant 0 : index
    %80 = vector.load %arg8[%c128, %c0_45] : memref<144x256xbf16, #tpu.memory_space<vmem>>, vector<16x256xbf16>
    tpu.vector_store %arg8[%c128, %c0_45], %79 {strides = array<i32>} : memref<144x256xbf16, #tpu.memory_space<vmem>>, vector<16x256xbf16>,
    %c0_46 = arith.constant 0 : index
    %c0_47 = arith.constant 0 : index
    %81 = vector.load %arg4[%c0_46, %c0_47] : memref<4x144xbf16, #tpu.memory_space<vmem>>, vector<4x144xbf16>
    %c0_48 = arith.constant 0 : index
    %c0_49 = arith.constant 0 : index
    %82 = vector.load %arg8[%c0_48, %c0_49] : memref<144x256xbf16, #tpu.memory_space<vmem>>, vector<144x256xbf16>
    %cst_50 = arith.constant dense<0.000000e+00> : vector<4x256xf32>
    %83 = tpu.matmul %81, %82, %cst_50 {dimension_numbers = #tpu.dot_dimension_numbers<[1], [0], [0], [1], [0, 0, 1, 1], [], []>} : vector<4x144xbf16>, vector<144x256xbf16>, vector<4x256xf32> -> vector<4x256xf32>
    %c0_51 = arith.constant 0 : index
    %c0_52 = arith.constant 0 : index
    %84 = vector.load %arg5[%c0_51, %c0_52] : memref<4x1xf32, #tpu.memory_space<vmem>>, vector<4x1xf32>
    %85 = vector.broadcast %84 : vector<4x1xf32> to vector<4x256xf32>
    %86 = arith.addf %83, %85 : vector<4x256xf32>
    %cst_53 = arith.constant 0.000000e+00 : f32
    %87 = vector.broadcast %cst_53 : f32 to vector<4x256xf32>
    %88 = arith.cmpf oge, %86, %87 : vector<4x256xf32>
    %cst_54 = arith.constant 1.000000e-01 : f32
    %89 = vector.broadcast %cst_54 : f32 to vector<4x256xf32>
    %90 = arith.mulf %89, %86 : vector<4x256xf32>
    %91 = arith.select %88, %86, %90 : vector<4x256xi1>, vector<4x256xf32>
    %92 = arith.addf %91, %1 : vector<4x256xf32>
    %c0_55 = arith.constant 0 : index
    %c0_56 = arith.constant 0 : index
    %c0_57 = arith.constant 0 : index
    %93 = vector.load %arg6[%c0_55, %c0_56, %c0_57] : memref<1x4x256xf32, #tpu.memory_space<vmem>>, vector<1x4x256xf32>
    %94 = vector.shape_cast %93 : vector<1x4x256xf32> to vector<4x256xf32>
    %95 = vector.shape_cast %92 : vector<4x256xf32> to vector<1x4x256xf32>
    tpu.vector_store %arg6[%c0_55, %c0_56, %c0_57], %95 {strides = array<i32>} : memref<1x4x256xf32, #tpu.memory_space<vmem>>, vector<1x4x256xf32>,
    return
  }
  func.func @transform_0(%arg0: i32) -> (i32, i32, i32) {
    %c0_i32 = arith.constant 0 : i32
    %c0_i32_0 = arith.constant 0 : i32
    %c0_i32_1 = arith.constant 0 : i32
    return %arg0, %c0_i32, %c0_i32_0 : i32, i32, i32
  }
  func.func @transform_1(%arg0: i32) -> (i32, i32) {
    %c0_i32 = arith.constant 0 : i32
    %c0_i32_0 = arith.constant 0 : i32
    %c0_i32_1 = arith.constant 0 : i32
    return %c0_i32, %c0_i32_0 : i32, i32
  }
  func.func @transform_2(%arg0: i32) -> (i32, i32) {
    %c0_i32 = arith.constant 0 : i32
    %c0_i32_0 = arith.constant 0 : i32
    %c0_i32_1 = arith.constant 0 : i32
    return %c0_i32, %c0_i32_0 : i32, i32
  }
  func.func @transform_3(%arg0: i32) -> (i32, i32) {
    %c0_i32 = arith.constant 0 : i32
    %c0_i32_0 = arith.constant 0 : i32
    %c0_i32_1 = arith.constant 0 : i32
    return %c0_i32, %c0_i32_0 : i32, i32
  }
  func.func @transform_4(%arg0: i32) -> (i32, i32) {
    %c0_i32 = arith.constant 0 : i32
    %c0_i32_0 = arith.constant 0 : i32
    %c0_i32_1 = arith.constant 0 : i32
    return %c0_i32, %c0_i32_0 : i32, i32
  }
  func.func @transform_5(%arg0: i32) -> (i32, i32, i32) {
    %c0_i32 = arith.constant 0 : i32
    %c0_i32_0 = arith.constant 0 : i32
    %c0_i32_1 = arith.constant 0 : i32
    return %arg0, %c0_i32, %c0_i32_0 : i32, i32, i32
  }
}

</mosaic_0001>

<llo_original>
// kernel: tpu_custom_call.1
$region0: #{tpu_custom_call.1}
  #allocation0 [shape = 'u32[]', space=smem, size = 0x4, offset = 0x4, fixed_abs, tag = 'smem constant byte address 0x4 - core index']
  #allocation1 [shape = 'u32[144,128]{1,0:T(1,128)}', space=vmem, size = 0x12000, scoped, tag = 'internal scratch']
  #allocation2 [shape = 'bf16[16,290]{1,0:T(16,128)(2,1)}', space=vmem, size = 0x3000, scoped, tag = 'scratch operand']
  #allocation3 [shape = 'bf16[144,256]{1,0:T(16,128)(2,1)}', space=vmem, size = 0x12000, scoped, tag = 'scratch operand']
  %s0 = inlined_call_operand.vmem [shape: f32[2,4,256], index: 0, kind: input, shape index: {}]
  %s1 = inlined_call_operand.vmem [shape: bf16[16,4], index: 1, kind: input, shape index: {}]
  %s2 = inlined_call_operand.vmem [shape: f32[16,1], index: 2, kind: input, shape index: {}]
  %s3 = inlined_call_operand.vmem [shape: bf16[4,144], index: 3, kind: input, shape index: {}]
  %s4 = inlined_call_operand.vmem [shape: f32[4,1], index: 4, kind: input, shape index: {}]
  %s5 = inlined_call_operand.hbm [shape: f32[2,4,256], index: 5, kind: output, shape index: {}]
  %s6 = sld [smem:[#allocation0]]
  $region53: #{tpu_custom_call.1} parent=0
    _
  %s8 = ssub.s32 1, %s6
  %s9 = scalar_select 0, %s8, %s6
  $region1: #{tpu_custom_call.1} parent=0
    #allocation4 [shape = 'u8[8192]{0}', space=vmem, size = 0x2000, scoped, tag = 'output window, operand 0']
    #allocation5 [shape = 's32[2]{0}', space=sflag, size = 0x8, scoped, tag = 'scoped memory for tpu_custom_call.1']
    %10 = vsyncpa [#allocation5], 0
    %s11 = scalar_lea.sflag [#allocation5], 1
    %12 = vsyncpa %s11, 0
    loop: start=0, step=1, limit=4
    $region2: #{tpu_custom_call.1} parent=1 // loop_pre_header
      _
    $region3: #{tpu_custom_call.1} parent=1 // loop_header
      %s14 = sphi 0, %s18
      %p15 = scmp.ge.s32.totalorder %s14, 4
      %s24 = sphi 0, %s26
      %s27 = sphi 0, %s24
      %s28 = sphi 0, %s27
      %s44 = sphi 0, %s28
      %s48 = sphi 0, %s48
      %s50 = sphi 0, %s48
      %s51 = sphi 0, %s50
      %s65 = sphi 0, %s51
      %s69 = sphi 0, %s69
      %s71 = sphi 0, %s69
      %s72 = sphi 0, %s71
      %s86 = sphi 0, %s72
      %s90 = sphi 0, %s90
      %s92 = sphi 0, %s90
      %s93 = sphi 0, %s92
      %s107 = sphi 0, %s93
      %s111 = sphi 0, %s111
      %s113 = sphi 0, %s111
      %s114 = sphi 0, %s113
      %s128 = sphi 0, %s114
      %s134 = sphi 0, %s136
      %s137 = sphi 0, %s134
      %s138 = sphi 0, %s137
      %s154 = sphi 0, %s138
    $region4: #{tpu_custom_call.1} parent=1 // loop_header_branch
      %17 = sbr.rel (%p15) target = $region8
    $region5: #{tpu_custom_call.1} parent=1 // loop_body
      %s19 = ssub.s32 %s14, 1
      %s20 = ssub.s32 %s14, 2
      %s21 = sadd.s32 %s14, 1
      %s22 = ssub.s32 %s14, %s21
      %p23 = scmp.eq.s32.totalorder %s22, 0
      %s25 = sadd.s32 %s24, 1
      %s26 = scalar_select %p23, %s24, %s25
      %p29 = pneg %p23
      %p30 = scmp.eq.s32.totalorder %s14, 1
      %p31 = por %p29, %p30
      %p32 = scmp.ne.s32.totalorder %s24, %s27
      %p33 = scmp.eq.s32.totalorder %s14, 0
      %p34 = por %p32, %p33
      %p35 = scmp.ne.s32.totalorder %s24, %s27
      %p36 = scmp.eq.s32.totalorder %s19, 1
      %p37 = por %p35, %p36
      %p38 = scmp.ne.s32.totalorder %s27, %s28
      %p39 = scmp.eq.s32.totalorder %s19, 0
      %p40 = por %p38, %p39
      %p41 = scmp.ne.s32.totalorder %s27, %s28
      %p42 = scmp.eq.s32.totalorder %s20, 1
      %p43 = por %p41, %p42
      %p45 = scmp.ne.s32.totalorder %s28, %s44
      %p46 = scmp.eq.s32.totalorder %s20, 0
      %p47 = por %p45, %p46
      %s49 = sadd.s32 %s48, 1
      %p52 = scmp.eq.s32.totalorder %s14, 1
      %p53 = scmp.ne.s32.totalorder %s48, %s50
      %p54 = scmp.eq.s32.totalorder %s14, 0
      %p55 = por %p53, %p54
      %p56 = scmp.ne.s32.totalorder %s48, %s50
      %p57 = scmp.eq.s32.totalorder %s19, 1
      %p58 = por %p56, %p57
      %p59 = scmp.ne.s32.totalorder %s50, %s51
      %p60 = scmp.eq.s32.totalorder %s19, 0
      %p61 = por %p59, %p60
      %p62 = scmp.ne.s32.totalorder %s50, %s51
      %p63 = scmp.eq.s32.totalorder %s20, 1
      %p64 = por %p62, %p63
      %p66 = scmp.ne.s32.totalorder %s51, %s65
      %p67 = scmp.eq.s32.totalorder %s20, 0
      %p68 = por %p66, %p67
      %s70 = sadd.s32 %s69, 1
      %p73 = scmp.eq.s32.totalorder %s14, 1
      %p74 = scmp.ne.s32.totalorder %s69, %s71
      %p75 = scmp.eq.s32.totalorder %s14, 0
      %p76 = por %p74, %p75
      %p77 = scmp.ne.s32.totalorder %s69, %s71
      %p78 = scmp.eq.s32.totalorder %s19, 1
      %p79 = por %p77, %p78
      %p80 = scmp.ne.s32.totalorder %s71, %s72
      %p81 = scmp.eq.s32.totalorder %s19, 0
      %p82 = por %p80, %p81
      %p83 = scmp.ne.s32.totalorder %s71, %s72
      %p84 = scmp.eq.s32.totalorder %s20, 1
      %p85 = por %p83, %p84
      %p87 = scmp.ne.s32.totalorder %s72, %s86
      %p88 = scmp.eq.s32.totalorder %s20, 0
      %p89 = por %p87, %p88
      %s91 = sadd.s32 %s90, 1
      %p94 = scmp.eq.s32.totalorder %s14, 1
      %p95 = scmp.ne.s32.totalorder %s90, %s92
      %p96 = scmp.eq.s32.totalorder %s14, 0
      %p97 = por %p95, %p96
      %p98 = scmp.ne.s32.totalorder %s90, %s92
      %p99 = scmp.eq.s32.totalorder %s19, 1
      %p100 = por %p98, %p99
      %p101 = scmp.ne.s32.totalorder %s92, %s93
      %p102 = scmp.eq.s32.totalorder %s19, 0
      %p103 = por %p101, %p102
      %p104 = scmp.ne.s32.totalorder %s92, %s93
      %p105 = scmp.eq.s32.totalorder %s20, 1
      %p106 = por %p104, %p105
      %p108 = scmp.ne.s32.totalorder %s93, %s107
      %p109 = scmp.eq.s32.totalorder %s20, 0
      %p110 = por %p108, %p109
      %s112 = sadd.s32 %s111, 1
      %p115 = scmp.eq.s32.totalorder %s14, 1
      %p116 = scmp.ne.s32.totalorder %s111, %s113
      %p117 = scmp.eq.s32.totalorder %s14, 0
      %p118 = por %p116, %p117
      %p119 = scmp.ne.s32.totalorder %s111, %s113
      %p120 = scmp.eq.s32.totalorder %s19, 1
      %p121 = por %p119, %p120
      %p122 = scmp.ne.s32.totalorder %s113, %s114
      %p123 = scmp.eq.s32.totalorder %s19, 0
      %p124 = por %p122, %p123
      %p125 = scmp.ne.s32.totalorder %s113, %s114
      %p126 = scmp.eq.s32.totalorder %s20, 1
      %p127 = por %p125, %p126
      %p129 = scmp.ne.s32.totalorder %s114, %s128
      %p130 = scmp.eq.s32.totalorder %s20, 0
      %p131 = por %p129, %p130
      %s132 = ssub.s32 %s14, %s21
      %p133 = scmp.eq.s32.totalorder %s132, 0
      %s135 = sadd.s32 %s134, 1
      %s136 = scalar_select %p133, %s134, %s135
      %p139 = pneg %p133
      %p140 = scmp.eq.s32.totalorder %s14, 1
      %p141 = por %p139, %p140
      %p142 = scmp.ne.s32.totalorder %s134, %s137
      %p143 = scmp.eq.s32.totalorder %s14, 0
      %p144 = por %p142, %p143
      %p145 = scmp.ne.s32.totalorder %s134, %s137
      %p146 = scmp.eq.s32.totalorder %s19, 1
      %p147 = por %p145, %p146
      %p148 = scmp.ne.s32.totalorder %s137, %s138
      %p149 = scmp.eq.s32.totalorder %s19, 0
      %p150 = por %p148, %p149
      %p151 = scmp.ne.s32.totalorder %s137, %s138
      %p152 = scmp.eq.s32.totalorder %s20, 1
      %p153 = por %p151, %p152
      %p155 = scmp.ne.s32.totalorder %s138, %s154
      %p156 = scmp.eq.s32.totalorder %s20, 0
      %p157 = por %p155, %p156
      %p158 = scmp.le.s32.totalorder 1, %s14
      %p159 = scmp.lt.s32.totalorder %s14, 3
      %p160 = pnand %p158, %p159
      %p161 = pneg %p160
      // Predicated region
      $region9: #{tpu_custom_call.1} parent=5 // pred_check
        _
      $region10: #{tpu_custom_call.1} parent=5 // pred_check_branch
        %163 = sbr.rel (%p160) target = $region12
      $region11: #{tpu_custom_call.1} parent=5 // pred_region
        %s164 = ssub.s32 %s14, 1
        // Predicated region
        $region13: #{tpu_custom_call.1} parent=11 // pred_check
          %p165 = pneg %p61
        $region14: #{tpu_custom_call.1} parent=11 // pred_check_branch
          %167 = sbr.rel (%p165) target = $region16
        $region15: #{tpu_custom_call.1} parent=11 // pred_region
          _
        $region16: #{tpu_custom_call.1} parent=11 // pred_fallthru
          _
        // Predicated region
        $region17: #{tpu_custom_call.1} parent=11 // pred_check
          %p168 = pneg %p82
        $region18: #{tpu_custom_call.1} parent=11 // pred_check_branch
          %170 = sbr.rel (%p168) target = $region20
        $region19: #{tpu_custom_call.1} parent=11 // pred_region
          _
        $region20: #{tpu_custom_call.1} parent=11 // pred_fallthru
          _
        // Predicated region
        $region21: #{tpu_custom_call.1} parent=11 // pred_check
          %p171 = pneg %p103
        $region22: #{tpu_custom_call.1} parent=11 // pred_check_branch
          %173 = sbr.rel (%p171) target = $region24
        $region23: #{tpu_custom_call.1} parent=11 // pred_region
          _
        $region24: #{tpu_custom_call.1} parent=11 // pred_fallthru
          _
        // Predicated region
        $region25: #{tpu_custom_call.1} parent=11 // pred_check
          %p174 = pneg %p124
        $region26: #{tpu_custom_call.1} parent=11 // pred_check_branch
          %176 = sbr.rel (%p174) target = $region28
        $region27: #{tpu_custom_call.1} parent=11 // pred_region
          _
        $region28: #{tpu_custom_call.1} parent=11 // pred_fallthru
          _
      $region12: #{tpu_custom_call.1} parent=5 // pred_fallthru
        _
      %p177 = scmp.lt.s32.totalorder %s14, 2
      // Predicated region
      $region29: #{tpu_custom_call.1} parent=5 // pred_check
        %p178 = pneg %p177
      $region30: #{tpu_custom_call.1} parent=5 // pred_check_branch
        %180 = sbr.rel (%p178) target = $region32
      $region31: #{tpu_custom_call.1} parent=5 // pred_region
        // Predicated region
        $region33: #{tpu_custom_call.1} parent=31 // pred_check
          %p181 = pneg %p34
        $region34: #{tpu_custom_call.1} parent=31 // pred_check_branch
          %183 = sbr.rel (%p181) target = $region36
        $region35: #{tpu_custom_call.1} parent=31 // pred_region
          %p184 = scmp.lt.s32.totalorder %s14, 1
          %s185 = scalar_select %p184, %s14, 1
          %s186 = smul.addr %s185, 2
          %s187 = smul.addr %s186, 4
          %s188 = scalar_lea.vmem %s0, %s187
        $region36: #{tpu_custom_call.1} parent=31 // pred_fallthru
          _
      $region32: #{tpu_custom_call.1} parent=5 // pred_fallthru
        _
      %p189 = scmp.le.s32.totalorder 1, %s14
      %p190 = scmp.lt.s32.totalorder %s14, 3
      %p191 = pnand %p189, %p190
      %p192 = pneg %p191
      // Predicated region
      $region37: #{tpu_custom_call.1} parent=5 // pred_check
        _
      $region38: #{tpu_custom_call.1} parent=5 // pred_check_branch
        %194 = sbr.rel (%p191) target = $region40
      $region39: #{tpu_custom_call.1} parent=5 // pred_region
        %s195 = ssub.s32 %s14, 1
        %p196 = scmp.lt.s32.totalorder %s19, 1
        %s197 = scalar_select %p196, %s19, 1
        %s198 = smul.addr %s197, 2
        %s199 = smul.addr %s198, 4
        %s200 = scalar_lea.vmem %s0, %s199
        %p201 = pneg %p40
        %p202 = pneg %p37
        %p203 = pneg %p61
        %p204 = pneg %p58
        %p205 = pneg %p82
        %p206 = pneg %p79
        %p207 = pneg %p103
        %p208 = pneg %p100
        %p209 = pneg %p124
        %p210 = pneg %p121
        %p211 = pneg %p150
        %p212 = pneg %p147
        %s213 = sand.u32 %s137, 1
        %s214 = scalar_lea.sflag [#allocation5], %s213
        %s215 = sand.u32 %s137, 1
        %s216 = smul.addr %s215, 8
        %s217 = scalar_lea.vmem [#allocation4], %s216
        %p218 = scmp.lt.s32.totalorder %s19, 1
        %s219 = scalar_select %p218, %s19, 1
        %s220 = smul.addr %s219, 2
        %s221 = smul.addr %s220, 4
        %s222 = scalar_lea.vmem %s0, %s221
        %v226 = vld [vmem:[%s222] sm:$0xff]
        %v227 = vld [vmem:[%s1] sm:$0xf]
        %v228 = vld [vmem:[%s1 + $0x4] sm:$0xf]
        %v230 = vcombine.high %v226, %v226
        %v232 = vpack.c.bf16 %v226, %v226
        %v233 = vpack.c.bf16 %v230, %v230
        %v234 = vld [vmem:[%s2] sm:$0xff]
        %v235 = vld [vmem:[%s2 + $0x8] sm:$0xff]
        %237 = vset.pattern.permute.xlu0 0
        %238 = vperm.xlu0 %237, %v234
        %v239 = vpop.permute.xlu0 %238
        %242 = vset.pattern.permute.xlu0 0
        %243 = vperm.xlu0 %242, %v235
        %v244 = vpop.permute.xlu0 %243
        %v248 = vunpack.c.l.b16 %v227
        %v249 = vunpack.c.l.b16 %v228
        %v250 = vpack.c.b16 %v249, %v248
        %vm251 = vcmask 31744
        %v253 = vsel %vm251, %v250, 0
        %vm255 = vcmask 1041408
        %v257 = vsel %vm255, %v232, 0
        %v260 = vsel %vm255, %v233, 0
        %262 = vmatprep.subr.bf16.mxu0 %v260
        %263 = vmatpush1.bf16.msra.mxu0 %v257
        %264 = vmatprep.subr.bf16.mxu0 0
        %265 = vmatpush1.bf16.msra.mxu0 0
        %266 = vmatprep.subr.bf16.mxu0 0
        %267 = vmatpush1.bf16.msra.mxu0 0
        %268 = vmatprep.subr.bf16.mxu0 0
        %269 = vmatpush1.bf16.msra.mxu0 0
        %270 = vmatprep.subr.bf16.mxu0 0
        %271 = vmatpush1.bf16.msra.mxu0 0
        %272 = vmatprep.subr.bf16.mxu0 0
        %273 = vmatpush1.bf16.msra.mxu0 0
        %274 = vmatprep.subr.bf16.mxu0 0
        %275 = vmatpush1.bf16.msra.mxu0 0
        %276 = vmatprep.subr.bf16.mxu0 0
        %277 = vmatpush1.bf16.msra.mxu0 0
        %278 = vmatprep.subr.bf16.mxu0 0
        %279 = vmatpush1.bf16.msra.mxu0 0
        %280 = vmatprep.subr.bf16.mxu0 0
        %281 = vmatpush1.bf16.msra.mxu0 0
        %282 = vmatprep.subr.bf16.mxu0 0
        %283 = vmatpush1.bf16.msra.mxu0 0
        %284 = vmatprep.subr.bf16.mxu0 0
        %285 = vmatpush1.bf16.msra.mxu0 0
        %286 = vmatprep.subr.bf16.mxu0 0
        %287 = vmatpush1.bf16.msra.mxu0 0
        %288 = vmatprep.subr.bf16.mxu0 0
        %289 = vmatpush1.bf16.msra.mxu0 0
        %290 = vmatprep.subr.bf16.mxu0 0
        %291 = vmatpush1.bf16.msra.mxu0 0
        %292 = vmatprep.subr.bf16.mxu0 0
        %293 = vmatpush1.bf16.msra.mxu0 0
        %294 = vmatprep.mubr.bf16.mxu0 0
        %295 = vmatmul.mubr.bf16.gmra.mrb[0].mxu0 %v253
        %v296 = vpop.f32.mrb[0].mxu0
        %v297 = vadd.f32 %v239, %v296
        %v298 = vpop.f32.mrb[0].mxu0
        %v299 = vadd.f32 %v239, %v298
        %v300 = vpop.f32.mrb[0].mxu0
        %v301 = vadd.f32 %v244, %v300
        %v302 = vpop.f32.mrb[0].mxu0
        %v303 = vadd.f32 %v244, %v302
        %304 = vdwg.mxu0
        %vm305 = vcmp.ge.f32.partialorder %v297, 0.0
        %vm306 = vcmp.ge.f32.partialorder %v299, 0.0
        %vm307 = vcmp.ge.f32.partialorder %v301, 0.0
        %vm308 = vcmp.ge.f32.partialorder %v303, 0.0
        %v309 = vmul.f32 %v297, 0.1
        %v310 = vmul.f32 %v299, 0.1
        %v311 = vmul.f32 %v301, 0.1
        %v312 = vmul.f32 %v303, 0.1
        %v313 = vsel %vm305, %v297, %v309
        %v314 = vsel %vm306, %v299, %v310
        %v315 = vsel %vm307, %v301, %v311
        %v316 = vsel %vm308, %v303, %v312
        %vm317 = vcmask 138240
        %318 = vst.msk [vmem:[#allocation2] sm:$0xff] %vm317, 0
        %vm319 = vcmask 277640
        %320 = vst.msk [vmem:[#allocation2 + $0x10] sm:$0xff] %vm319, 0
        %v321 = vpack.c.bf16 %v315, %v313
        %v322 = vpack.c.bf16 %v316, %v314
        %325 = vrot.lane.b32.xlu0 %v321, 17
        %v326 = vpop.permute.xlu0 %325
        %327 = vrot.lane.b32.xlu0 %v322, 17
        %v328 = vpop.permute.xlu0 %327
        %vm329 = vcmask 138240
        %v330 = vsel %vm329, %v326, %v328
        %vm334 = vcmask 1047688
        %335 = vst.msk [vmem:[#allocation2] sm:$0xff] %vm334, %v326
        %336 = vst [vmem:[#allocation2 + $0x8] sm:$0xff] %v330
        %337 = vst.msk [vmem:[#allocation2 + $0x10] sm:$0xff] %vm317, %v328
        %v338 = vlaneseq
        %v339 = vand.u32 %v338, 127
        %v340 = vadd.s32 %v339, 128
        %vm341 = vcmp.lt.s32.totalorder %v339, 0
        %v342 = vsub.s32 0, %v339
        %v343 = vsel %vm341, %v342, %v339
        %v344 = vshrl.u32 %v343, 4
        %v345 = vand.u32 %v343, 15
        %v346 = vsub.s32 0, %v345
        %v347 = vsel %vm341, %v346, %v345
        %vm348 = vcmp.lt.s32.totalorder %v340, 0
        %v349 = vsub.s32 0, %v340
        %v350 = vsel %vm348, %v349, %v340
        %v351 = vshrl.u32 %v350, 4
        %v352 = vand.u32 %v350, 15
        %v353 = vsub.s32 0, %v352
        %v354 = vsel %vm348, %v353, %v352
        %vm355 = vcmp.ne.s32.totalorder %v347, 0
        %vm356 = vcmp.ne.s32.totalorder %v354, 0
        %vm357 = vcmp.lt.s32.totalorder %v347, 0
        %vm358 = vcmp.lt.s32.totalorder %v354, 0
        %vm359 = vmand %vm357, %vm355
        %vm360 = vmand %vm358, %vm356
        %v361 = vadd.s32 %v347, 16
        %v362 = vadd.s32 %v354, 16
        %v363 = vsel %vm359, %v361, %v347
        %v364 = vsel %vm360, %v362, %v354
        %vm365 = vcmp.ne.s32.totalorder %v363, 0
        %vm366 = vcmp.ne.s32.totalorder %v364, 0
        %vm367 = vcmp.ne.s32.totalorder %v363, 15
        %vm368 = vcmp.ne.s32.totalorder %v364, 15
        %v369 = vld [vmem:[#allocation2] sm:$0xff]
        %v370 = vld [vmem:[#allocation2 + $0x8] sm:$0xff]
        %v371 = vsel %vm365, 1, 0
        %v372 = vsel %vm366, 1, 0
        %vm373 = vcmp.eq.s32.totalorder %v371, 1
        %vm374 = vcmp.eq.s32.totalorder %v372, 1
        %vm375 = vmpackc.low %vm374, %vm373
        %v376 = vsel %vm375, 65537, 0
        %v377 = vlaneseq
        %v378 = vshrl.u32 %v377, 7
        %v379 = vsub.s32 0, %v378
        %v380 = vrot.slane %v376, %v379
        %v381 = vlaneseq
        %v382 = vshrl.u32 %v381, 7
        %v383 = vsub.s32 4, %v382
        %v384 = vrot.slane %v376, %v383
        %vm385 = vcmp.ne.s16.totalorder %v380, 0
        %vm386 = vcmp.ne.s16.totalorder %v384, 0
        %v387 = vsel %vm385, %v369, 0
        %v388 = vsel %vm386, %v370, 0
        %389 = vst [vmem:[#allocation3] sm:$0xff] %v387
        %390 = vst [vmem:[#allocation3 + $0x8] sm:$0xff] %v388
        %v391 = vld [vmem:[#allocation2] sm:$0xff]
        %v392 = vld [vmem:[#allocation2 + $0x8] sm:$0xff]
        %v393 = vld [vmem:[#allocation2 + $0x10] sm:$0xff]
        %397 = vrot.lane.b32.xlu0 %v391, 127
        %v398 = vpop.permute.xlu0 %397
        %399 = vrot.lane.b32.xlu0 %v392, 127
        %v400 = vpop.permute.xlu0 %399
        %401 = vrot.lane.b32.xlu0 %v393, 127
        %v402 = vpop.permute.xlu0 %401
        %vm403 = vcmask 1039360
        %v404 = vsel %vm403, %v398, %v400
        %v405 = vsel %vm403, %v400, %v402
        %408 = vst [vmem:[#allocation3 + $0x10] sm:$0xff] %v404
        %409 = vst [vmem:[#allocation3 + $0x18] sm:$0xff] %v405
        %v410 = vld [vmem:[#allocation2] sm:$0xff]
        %v411 = vld [vmem:[#allocation2 + $0x8] sm:$0xff]
        %v412 = vld [vmem:[#allocation2 + $0x10] sm:$0xff]
        %v413 = vsel %vm367, 1, 0
        %v414 = vsel %vm368, 1, 0
        %vm415 = vcmp.eq.s32.totalorder %v413, 1
        %vm416 = vcmp.eq.s32.totalorder %v414, 1
        %vm417 = vmpackc.low %vm416, %vm415
        %v418 = vsel %vm417, 65537, 0
        %v419 = vlaneseq
        %v420 = vshrl.u32 %v419, 7
        %v421 = vsub.s32 0, %v420
        %v422 = vrot.slane %v418, %v421
        %v423 = vlaneseq
        %v424 = vshrl.u32 %v423, 7
        %v425 = vsub.s32 4, %v424
        %v426 = vrot.slane %v418, %v425
        %427 = vrot.lane.b32.xlu0 %v422, 2
        %v428 = vpop.permute.xlu0 %427
        %429 = vrot.lane.b32.xlu0 %v426, 2
        %v430 = vpop.permute.xlu0 %429
        %vm431 = vcmask 15360
        %v432 = vsel %vm431, %v428, %v430
        %vm433 = vcmp.ne.s16.totalorder %v428, 0
        %vm434 = vcmp.ne.s16.totalorder %v432, 0
        %vm435 = vcmp.ne.s16.totalorder %v430, 0
        %v436 = vsel %vm433, %v410, 0
        %v437 = vsel %vm434, %v411, 0
        %v438 = vsel %vm435, %v412, 0
        %442 = vrot.lane.b32.xlu0 %v436, 126
        %v443 = vpop.permute.xlu0 %442
        %444 = vrot.lane.b32.xlu0 %v437, 126
        %v445 = vpop.permute.xlu0 %444
        %446 = vrot.lane.b32.xlu0 %v438, 126
        %v447 = vpop.permute.xlu0 %446
        %vm448 = vcmask 1031168
        %v449 = vsel %vm448, %v443, %v445
        %v450 = vsel %vm448, %v445, %v447
        %453 = vst [vmem:[#allocation3 + $0x20] sm:$0xff] %v449
        %454 = vst [vmem:[#allocation3 + $0x28] sm:$0xff] %v450
        %v455 = vld [vmem:[#allocation2] sm:$0xff]
        %v456 = vld [vmem:[#allocation2 + $0x8] sm:$0xff]
        %v457 = vld [vmem:[#allocation2 + $0x10] sm:$0xff]
        %458 = vrot.lane.b32.xlu0 %v380, 16
        %v459 = vpop.permute.xlu0 %458
        %460 = vrot.lane.b32.xlu0 %v384, 16
        %v461 = vpop.permute.xlu0 %460
        %vm462 = vcmask 130048
        %v463 = vsel %vm462, %v459, %v461
        %vm464 = vcmp.ne.s16.totalorder %v459, 0
        %vm465 = vcmp.ne.s16.totalorder %v463, 0
        %vm466 = vcmp.ne.s16.totalorder %v461, 0
        %v467 = vsel %vm464, %v455, 0
        %v468 = vsel %vm465, %v456, 0
        %v469 = vsel %vm466, %v457, 0
        %473 = vrot.lane.b32.xlu0 %v467, 112
        %v474 = vpop.permute.xlu0 %473
        %475 = vrot.lane.b32.xlu0 %v468, 112
        %v476 = vpop.permute.xlu0 %475
        %477 = vrot.lane.b32.xlu0 %v469, 112
        %v478 = vpop.permute.xlu0 %477
        %vm479 = vcmask 916480
        %v480 = vsel %vm479, %v474, %v476
        %v481 = vsel %vm479, %v476, %v478
        %484 = vst [vmem:[#allocation3 + $0x30] sm:$0xff] %v480
        %485 = vst [vmem:[#allocation3 + $0x38] sm:$0xff] %v481
        %v486 = vld [vmem:[#allocation2] sm:$0xff]
        %v487 = vld [vmem:[#allocation2 + $0x8] sm:$0xff]
        %v488 = vld [vmem:[#allocation2 + $0x10] sm:$0xff]
        %492 = vrot.lane.b32.xlu0 %v486, 111
        %v493 = vpop.permute.xlu0 %492
        %494 = vrot.lane.b32.xlu0 %v487, 111
        %v495 = vpop.permute.xlu0 %494
        %496 = vrot.lane.b32.xlu0 %v488, 111
        %v497 = vpop.permute.xlu0 %496
        %vm498 = vcmask 908288
        %v499 = vsel %vm498, %v493, %v495
        %v500 = vsel %vm498, %v495, %v497
        %503 = vst [vmem:[#allocation3 + $0x40] sm:$0xff] %v499
        %504 = vst [vmem:[#allocation3 + $0x48] sm:$0xff] %v500
        %v505 = vld [vmem:[#allocation2] sm:$0xff]
        %v506 = vld [vmem:[#allocation2 + $0x8] sm:$0xff]
        %v507 = vld [vmem:[#allocation2 + $0x10] sm:$0xff]
        %508 = vrot.lane.b32.xlu0 %v422, 18
        %v509 = vpop.permute.xlu0 %508
        %510 = vrot.lane.b32.xlu0 %v426, 18
        %v511 = vpop.permute.xlu0 %510
        %vm512 = vcmask 146432
        %v513 = vsel %vm512, %v509, %v511
        %vm514 = vcmp.ne.s16.totalorder %v509, 0
        %vm515 = vcmp.ne.s16.totalorder %v513, 0
        %vm516 = vcmp.ne.s16.totalorder %v511, 0
        %v517 = vsel %vm514, %v505, 0
        %v518 = vsel %vm515, %v506, 0
        %v519 = vsel %vm516, %v507, 0
        %523 = vrot.lane.b32.xlu0 %v517, 110
        %v524 = vpop.permute.xlu0 %523
        %525 = vrot.lane.b32.xlu0 %v518, 110
        %v526 = vpop.permute.xlu0 %525
        %527 = vrot.lane.b32.xlu0 %v519, 110
        %v528 = vpop.permute.xlu0 %527
        %vm529 = vcmask 900096
        %v530 = vsel %vm529, %v524, %v526
        %v531 = vsel %vm529, %v526, %v528
        %534 = vst [vmem:[#allocation3 + $0x50] sm:$0xff] %v530
        %535 = vst [vmem:[#allocation3 + $0x58] sm:$0xff] %v531
        %v536 = vld [vmem:[#allocation2] sm:$0xff]
        %v537 = vld [vmem:[#allocation2 + $0x8] sm:$0xff]
        %v538 = vld [vmem:[#allocation2 + $0x10] sm:$0xff]
        %539 = vrot.lane.b32.xlu0 %v380, 32
        %v540 = vpop.permute.xlu0 %539
        %541 = vrot.lane.b32.xlu0 %v384, 32
        %v542 = vpop.permute.xlu0 %541
        %vm543 = vcmask 261120
        %v544 = vsel %vm543, %v540, %v542
        %vm545 = vcmp.ne.s16.totalorder %v540, 0
        %vm546 = vcmp.ne.s16.totalorder %v544, 0
        %vm547 = vcmp.ne.s16.totalorder %v542, 0
        %v548 = vsel %vm545, %v536, 0
        %v549 = vsel %vm546, %v537, 0
        %v550 = vsel %vm547, %v538, 0
        %554 = vrot.lane.b32.xlu0 %v548, 96
        %v555 = vpop.permute.xlu0 %554
        %556 = vrot.lane.b32.xlu0 %v549, 96
        %v557 = vpop.permute.xlu0 %556
        %558 = vrot.lane.b32.xlu0 %v550, 96
        %v559 = vpop.permute.xlu0 %558
        %vm560 = vcmask 785408
        %v561 = vsel %vm560, %v555, %v557
        %v562 = vsel %vm560, %v557, %v559
        %565 = vst [vmem:[#allocation3 + $0x60] sm:$0xff] %v561
        %566 = vst [vmem:[#allocation3 + $0x68] sm:$0xff] %v562
        %v567 = vld [vmem:[#allocation2] sm:$0xff]
        %v568 = vld [vmem:[#allocation2 + $0x8] sm:$0xff]
        %v569 = vld [vmem:[#allocation2 + $0x10] sm:$0xff]
        %573 = vrot.lane.b32.xlu0 %v567, 95
        %v574 = vpop.permute.xlu0 %573
        %575 = vrot.lane.b32.xlu0 %v568, 95
        %v576 = vpop.permute.xlu0 %575
        %577 = vrot.lane.b32.xlu0 %v569, 95
        %v578 = vpop.permute.xlu0 %577
        %vm579 = vcmask 777216
        %v580 = vsel %vm579, %v574, %v576
        %v581 = vsel %vm579, %v576, %v578
        %584 = vst [vmem:[#allocation3 + $0x70] sm:$0xff] %v580
        %585 = vst [vmem:[#allocation3 + $0x78] sm:$0xff] %v581
        %v586 = vld [vmem:[#allocation2] sm:$0xff]
        %v587 = vld [vmem:[#allocation2 + $0x8] sm:$0xff]
        %v588 = vld [vmem:[#allocation2 + $0x10] sm:$0xff]
        %589 = vrot.lane.b32.xlu0 %v422, 34
        %v590 = vpop.permute.xlu0 %589
        %591 = vrot.lane.b32.xlu0 %v426, 34
        %v592 = vpop.permute.xlu0 %591
        %vm593 = vcmask 277504
        %v594 = vsel %vm593, %v590, %v592
        %vm595 = vcmp.ne.s16.totalorder %v590, 0
        %vm596 = vcmp.ne.s16.totalorder %v594, 0
        %vm597 = vcmp.ne.s16.totalorder %v592, 0
        %v598 = vsel %vm595, %v586, 0
        %v599 = vsel %vm596, %v587, 0
        %v600 = vsel %vm597, %v588, 0
        %604 = vrot.lane.b32.xlu0 %v598, 94
        %v605 = vpop.permute.xlu0 %604
        %606 = vrot.lane.b32.xlu0 %v599, 94
        %v607 = vpop.permute.xlu0 %606
        %608 = vrot.lane.b32.xlu0 %v600, 94
        %v609 = vpop.permute.xlu0 %608
        %vm610 = vcmask 769024
        %v611 = vsel %vm610, %v605, %v607
        %v612 = vsel %vm610, %v607, %v609
        %615 = vst [vmem:[#allocation3 + $0x80] sm:$0xff] %v611
        %616 = vst [vmem:[#allocation3 + $0x88] sm:$0xff] %v612
        %v617 = vld [vmem:[%s3] sm:$0xf]
        %v618 = vld [vmem:[#allocation3] sm:$0xff]
        %v619 = vld [vmem:[#allocation3 + $0x8] sm:$0xff]
        %v620 = vld [vmem:[#allocation3 + $0x10] sm:$0xff]
        %v621 = vld [vmem:[#allocation3 + $0x18] sm:$0xff]
        %v622 = vld [vmem:[#allocation3 + $0x20] sm:$0xff]
        %v623 = vld [vmem:[#allocation3 + $0x28] sm:$0xff]
        %v624 = vld [vmem:[#allocation3 + $0x30] sm:$0xff]
        %v625 = vld [vmem:[#allocation3 + $0x38] sm:$0xff]
        %v626 = vld [vmem:[#allocation3 + $0x40] sm:$0xff]
        %v627 = vld [vmem:[#allocation3 + $0x48] sm:$0xff]
        %v628 = vld [vmem:[#allocation3 + $0x50] sm:$0xff]
        %v629 = vld [vmem:[#allocation3 + $0x58] sm:$0xff]
        %v630 = vld [vmem:[#allocation3 + $0x60] sm:$0xff]
        %v631 = vld [vmem:[#allocation3 + $0x68] sm:$0xff]
        %v632 = vld [vmem:[#allocation3 + $0x70] sm:$0xff]
        %v633 = vld [vmem:[#allocation3 + $0x78] sm:$0xff]
        %v634 = vld [vmem:[#allocation3 + $0x80] sm:$0xff]
        %v635 = vld [vmem:[#allocation3 + $0x88] sm:$0xff]
        %v636 = vld [vmem:[%s4] sm:$0xf]
        %638 = vset.pattern.permute.xlu0 0
        %639 = vperm.xlu0 %638, %v636
        %v640 = vpop.permute.xlu0 %639
        %v644 = vunpack.c.l.s4 1983009808
        %v645 = vunpack.c.0.s8 %v644
        %v646 = vlaneseq
        %v647 = vshrl.u32 %v646, 7
        %v648 = vsub.s32 %v645, %v647
        %v649 = vrot.slane %v617, %v648
        %v650 = vcombine.high %v649, %v649
        %vm652 = vcmask 130048
        %v654 = vsel %vm652, %v650, 0
        %656 = vmatprep.subr.bf16.mxu0 %v619
        %657 = vmatpush1.bf16.msra.mxu0 %v618
        %658 = vmatprep.subr.bf16.mxu0 %v621
        %659 = vmatpush1.bf16.msra.mxu0 %v620
        %660 = vmatprep.subr.bf16.mxu0 %v623
        %661 = vmatpush1.bf16.msra.mxu0 %v622
        %662 = vmatprep.subr.bf16.mxu0 %v625
        %663 = vmatpush1.bf16.msra.mxu0 %v624
        %664 = vmatprep.subr.bf16.mxu0 %v627
        %665 = vmatpush1.bf16.msra.mxu0 %v626
        %666 = vmatprep.subr.bf16.mxu0 %v629
        %667 = vmatpush1.bf16.msra.mxu0 %v628
        %668 = vmatprep.subr.bf16.mxu0 %v631
        %669 = vmatpush1.bf16.msra.mxu0 %v630
        %670 = vmatprep.subr.bf16.mxu0 %v633
        %671 = vmatpush1.bf16.msra.mxu0 %v632
        %672 = vmatprep.subr.bf16.mxu0 %v635
        %673 = vmatpush1.bf16.msra.mxu0 %v634
        %674 = vmatprep.subr.bf16.mxu0 0
        %675 = vmatpush1.bf16.msra.mxu0 0
        %676 = vmatprep.subr.bf16.mxu0 0
        %677 = vmatpush1.bf16.msra.mxu0 0
        %678 = vmatprep.subr.bf16.mxu0 0
        %679 = vmatpush1.bf16.msra.mxu0 0
        %680 = vmatprep.subr.bf16.mxu0 0
        %681 = vmatpush1.bf16.msra.mxu0 0
        %682 = vmatprep.subr.bf16.mxu0 0
        %683 = vmatpush1.bf16.msra.mxu0 0
        %684 = vmatprep.subr.bf16.mxu0 0
        %685 = vmatpush1.bf16.msra.mxu0 0
        %686 = vmatprep.subr.bf16.mxu0 0
        %687 = vmatpush1.bf16.msra.mxu0 0
        %688 = vmatprep.mubr.bf16.mxu0 %v654
        %689 = vmatmul.mubr.bf16.gmra.mrb[0].mxu0 %v649
        %v690 = vpop.f32.mrb[0].mxu0
        %v691 = vadd.f32 %v640, %v690
        %v692 = vpop.f32.mrb[0].mxu0
        %v693 = vadd.f32 %v640, %v692
        %v694 = vpop.f32.mrb[0].mxu0
        %v695 = vpop.f32.mrb[0].mxu0
        %696 = vdwg.mxu0
        %vm697 = vcmp.ge.f32.partialorder %v691, 0.0
        %vm698 = vcmp.ge.f32.partialorder %v693, 0.0
        %v699 = vmul.f32 %v691, 0.1
        %v700 = vmul.f32 %v693, 0.1
        %v701 = vsel %vm697, %v691, %v699
        %v702 = vsel %vm698, %v693, %v700
        %v703 = vadd.f32 %v701, %v226
        %v704 = vadd.f32 %v702, %v230
        %v707 = vcombine.low %v703, %v704
        %709 = vst [vmem:[%s217] sm:$0xff] %v707
        %s710 = sand.u32 %s137, 1
        %s711 = scalar_lea.sflag [#allocation5], %s710
        %s712 = sand.u32 %s137, 1
        %s713 = smul.addr %s712, 8
        %s714 = scalar_lea.vmem [#allocation4], %s713
        // Predicated region
        $region41: #{tpu_custom_call.1} parent=39 // pred_check
          %p715 = pneg %p147
        $region42: #{tpu_custom_call.1} parent=39 // pred_check_branch
          %717 = sbr.rel (%p715) target = $region44
        $region43: #{tpu_custom_call.1} parent=39 // pred_region
          %s719 = ssub.s32 128, 128
          %720 = vsyncadd %s711, %s719
          %s721 = smul.addr %s19, 2
          %s722 = smul.addr %s721, 64
          %s723 = scalar_lea.hbm %s5, %s722
          %s725 = sshll.u32 %s714, 4
          %s726 = int_to_ptr.vmem [resolvable:$true] %s725
          %728 = dma.vmem_to_hbm [thread:$0]  %s726, 128, %s723, %s711
        $region44: #{tpu_custom_call.1} parent=39 // pred_fallthru
          _
      $region40: #{tpu_custom_call.1} parent=5 // pred_fallthru
        _
      %p729 = scmp.le.s32.totalorder 2, %s14
      // Predicated region
      $region45: #{tpu_custom_call.1} parent=5 // pred_check
        %p730 = pneg %p729
      $region46: #{tpu_custom_call.1} parent=5 // pred_check_branch
        %732 = sbr.rel (%p730) target = $region48
      $region47: #{tpu_custom_call.1} parent=5 // pred_region
        %s733 = ssub.s32 %s14, 2
        // Predicated region
        $region49: #{tpu_custom_call.1} parent=47 // pred_check
          %p734 = pneg %p153
        $region50: #{tpu_custom_call.1} parent=47 // pred_check_branch
          %736 = sbr.rel (%p734) target = $region52
        $region51: #{tpu_custom_call.1} parent=47 // pred_region
          %s737 = sand.u32 %s138, 1
          %s738 = scalar_lea.sflag [#allocation5], %s737
          %s739 = sand.u32 %s138, 1
          %s740 = smul.addr %s739, 8
          %s741 = scalar_lea.vmem [#allocation4], %s740
          %742 = dma.done %s738, 128
        $region52: #{tpu_custom_call.1} parent=47 // pred_fallthru
          _
      $region48: #{tpu_custom_call.1} parent=5 // pred_fallthru
        _
    $region6: #{tpu_custom_call.1} parent=1 // loop_footer
      %s18 = sadd.s32 1, %s14
    $region7: #{tpu_custom_call.1} parent=1 // loop_footer_branch
      %13 = sbr.rel target = $region3
    $region8: #{tpu_custom_call.1} parent=1 // loop_exit
      _
    %743 = vsyncpa [#allocation5], 1
    %s744 = scalar_lea.sflag [#allocation5], 1
    %745 = vsyncpa %s744, 1

</llo_original>
